<compile_context>
chip_gen: v7x
topology: tpu7x:2x2x1
jax: 0.10.0
libtpu: 0.0.40
codegen_flags: <defaults>
</compile_context>

<pallas_src>
import jax
import jax.numpy as jnp
from jax.experimental import pallas as pl
from jax.experimental.pallas import tpu as pltpu


# --------------------------------------------------------------------------- #
# Kernel
# --------------------------------------------------------------------------- #
def _make_agg_kernel(n_inputs, tn):
    """o[b] = sum_i W_i[TCO, C_i] @ x_i[b, C_i, TP] + bias[TCO, 1], b in [0, TN)."""

    def kernel(*refs):
        x_refs = refs[:n_inputs]
        w_refs = refs[n_inputs:2 * n_inputs]
        b_ref = refs[2 * n_inputs]
        o_ref = refs[2 * n_inputs + 1]

        bias = b_ref[...].astype(jnp.float32)          # (TCO, 1), hoisted
        # TODO(synk): if n_inputs is large with tiny C_i, copy the x_i tiles
        # into one VMEM scratch and issue a single dot with K=sum(C_i); low
        # priority while the kernel is HBM-bandwidth bound.
        for b in range(tn):                             # static, small
            acc = jnp.dot(w_refs[0][...], x_refs[0][b],
                          preferred_element_type=jnp.float32)
            for w_ref, x_ref in zip(w_refs[1:], x_refs[1:]):
                acc = acc + jnp.dot(w_ref[...], x_ref[b],
                                    preferred_element_type=jnp.float32)
            o_ref[b] = (acc + bias).astype(o_ref.dtype)

    return kernel


# --------------------------------------------------------------------------- #
# Tiling / VMEM sizing
# --------------------------------------------------------------------------- #
def _pad_up(x, m):
    return ((x + m - 1) // m) * m


def _sublane(dtype):
    return 16 if jnp.dtype(dtype).itemsize == 2 else 8


def _vmem_capacity_bytes():
    """Physical per-core VMEM; conservative 64 MiB fallback (v7x-sized)."""
    try:
        info = pltpu.get_tpu_info()
        cap = getattr(info, "vmem_capacity_bytes", None)
        if cap:
            return int(cap)
    except Exception:
        pass
    return 64 * 1024 * 1024


def _choose_tiles(N, P, channel_sizes, c_out, x_dtype, w_dtype, usable_vmem):
    """Pick (TN, TCO, TP) so double-buffered tiles + resident weights fit VMEM."""
    item_x = jnp.dtype(x_dtype).itemsize
    item_w = jnp.dtype(w_dtype).itemsize
    sub_x = _sublane(x_dtype)
    sub_w = _sublane(w_dtype)
    sub_o = _sublane(x_dtype)

    # --- C_out tiling: keep the resident weight slab small for big projections.
    w_slab = (_pad_up(c_out, sub_w)
              * sum(_pad_up(c, 128) for c in channel_sizes) * item_w)
    if c_out > 256 and w_slab > 4 * 1024 * 1024:
        tco = 256                       # matches 2x256 MXU tile on v6e/v7x
    else:
        tco = c_out

    # --- Bytes resident regardless of TP/TN: weight + bias tiles, x2 buffers,
    # with sublane/lane padding included (the old sizer ignored these).
    fixed = 2 * (_pad_up(tco, sub_w)
                 * sum(_pad_up(c, 128) for c in channel_sizes) * item_w)
    fixed += 2 * _pad_up(tco, 8) * 128 * 4            # f32 bias tile
    budget = usable_vmem - fixed - (2 << 20)          # slack for compiler scratch
    budget = max(budget, 2 << 20)

    # --- Pixel tile: bytes per 128-lane column group, in + out, double-buffered.
    per_chunk = ((sum(_pad_up(c, sub_x) for c in channel_sizes)
                  + _pad_up(tco, sub_o)) * item_x) * 2 * 128
    p_full = P if P < 128 else _pad_up(P, 128)
    max_tp_budget = max(1, budget // max(per_chunk, 1)) * 128
    if P < 128:
        tp = P                                        # full-extent block
    else:
        tp = min(p_full, max_tp_budget, 32768)        # lane cap 32K (was 4096)
        tp = max(128, (tp // 128) * 128)

    # --- Batch blocking: if one tile covers the whole image and budget remains,
    # process several images per grid step to amortise per-step overhead.
    tn = 1
    if tp >= P and N > 1:
        per_image = ((sum(_pad_up(c, sub_x) for c in channel_sizes)
                      + _pad_up(tco, sub_o)) * item_x) * 2 * _pad_up(tp, 128)
        tn = int(min(N, max(1, budget // max(per_image, 1))))

    # --- Megacore: guarantee >= 2 parallel blocks so both v7x cores get work.
    def n_blocks(tn_, tco_, tp_):
        return pl.cdiv(N, tn_) * pl.cdiv(c_out, tco_) * pl.cdiv(P, tp_)

    if n_blocks(tn, tco, tp) < 2:
        if N > 1:
            tn = max(1, -(-N // 2))                   # -> 2 batch blocks
        elif P >= 256 and tp >= 256:
            tp = max(128, _pad_up(-(-P // 2), 128))   # -> 2 pixel blocks

    return int(tn), int(tco), int(tp)


# --------------------------------------------------------------------------- #
# pallas_call wrapper
# --------------------------------------------------------------------------- #
def _aggregate_project(xs_3d, weight_splits, bias):
    """xs_3d: list of (N, C_i, P); weight_splits: list of (C_out, C_i); bias: (C_out, 1)."""
    N, _, P = xs_3d[0].shape
    c_out = bias.shape[0]
    channel_sizes = [int(x.shape[1]) for x in xs_3d]
    x_dtype = xs_3d[0].dtype
    w_dtype = weight_splits[0].dtype

    usable = int(_vmem_capacity_bytes() * 0.75)       # leave headroom
    usable = max(24 * 1024 * 1024, min(usable, 100 * 1024 * 1024))

    tn, tco, tp = _choose_tiles(N, P, channel_sizes, c_out,
                                x_dtype, w_dtype, usable)

    grid = (pl.cdiv(N, tn), pl.cdiv(c_out, tco), pl.cdiv(P, tp))

    x_specs = [
        pl.BlockSpec((tn, c, tp), lambda n, co, p: (n, 0, p))
        for c in channel_sizes
    ]
    w_specs = [
        pl.BlockSpec((tco, c), lambda n, co, p: (co, 0))
        for c in channel_sizes
    ]
    b_spec = pl.BlockSpec((tco, 1), lambda n, co, p: (co, 0))
    out_spec = pl.BlockSpec((tn, tco, tp), lambda n, co, p: (n, co, p))

    kernel = _make_agg_kernel(len(xs_3d), tn)

    return pl.pallas_call(
        kernel,
        out_shape=jax.ShapeDtypeStruct((N, c_out, P), x_dtype),
        grid_spec=pltpu.PrefetchScalarGridSpec(
            num_scalar_prefetch=0,
            grid=grid,
            in_specs=x_specs + w_specs + [b_spec],
            out_specs=out_spec,
        ),
        compiler_params=pltpu.CompilerParams(
            dimension_semantics=("parallel", "parallel", "parallel"),
            vmem_limit_bytes=usable,
        ),
    )(*xs_3d, *weight_splits, bias)


# --------------------------------------------------------------------------- #
# Module
# --------------------------------------------------------------------------- #
class LinearAggregation:
    """JAX/Pallas equivalent of pytorch_retrieve conv aggregation `Linear`."""

    def __init__(self, inputs, out_channels, key, dtype=jnp.float32):
        self.channel_sizes = [int(c) for c in inputs.values()]
        in_channels = sum(self.channel_sizes)
        self.in_channels = in_channels
        self.out_channels = out_channels
        self.dtype = dtype
        k_w, k_b = jax.random.split(key)
        # Conv2d default init: uniform in +-1/sqrt(fan_in), fan_in = C_in * 1 * 1.
        bound = 1.0 / (in_channels ** 0.5)
        # PyTorch Conv2d weight is (C_out, C_in, 1, 1); stored as (C_out, C_in),
        # already the layout the kernel consumes (no per-call transpose).
        self.weight = jax.random.uniform(
            k_w, (out_channels, in_channels), jnp.float32, -bound, bound
        ).astype(dtype)
        # Bias stays fp32; the kernel adds it in fp32 and casts at the store.
        self.bias = jax.random.uniform(
            k_b, (out_channels, 1), jnp.float32, -bound, bound
        )
        # Pre-split the weight along C_in (once, at init): the channel concat
        # is fused into the kernel as a sum of per-input partial matmuls.
        offs = [0]
        for c in self.channel_sizes:
            offs.append(offs[-1] + c)
        self.weight_splits = [
            self.weight[:, offs[i]:offs[i + 1]]
            for i in range(len(self.channel_sizes))
        ]

    def _apply(self, inpts_nchw):
        N, _, H, W = inpts_nchw[0].shape
        assert sum(int(x.shape[1]) for x in inpts_nchw) == self.in_channels
        # NCHW -> (N, C, H*W): collapses contiguous trailing dims (free reshape).
        xs_3d = [
            x.astype(self.dtype).reshape(x.shape[0], x.shape[1], H * W)
            for x in inpts_nchw
        ]
        y3d = _aggregate_project(xs_3d, self.weight_splits, self.bias)
        return y3d.reshape(N, self.out_channels, H, W)

    def __call__(self, x):
        """x: dict mapping names -> NCHW arrays (or lists of NCHW arrays)."""
        inpts = list(x.values())
        inpt_0 = inpts[0]
        if isinstance(inpt_0, list):
            return [
                self._apply([inpt[ind] for inpt in inpts])
                for ind in range(len(inpt_0))
            ]
        return self._apply(inpts)


# --------------------------------------------------------------------------- #
# Self-test
# --------------------------------------------------------------------------- #
if __name__ == "__main__":
    key = jax.random.PRNGKey(0)

    # ---- Test 1: fp32, the module's canonical small shape -------------------
    k_mod, k_a, k_b = jax.random.split(key, 3)
    inputs_spec = {"a": 4, "b": 4}
    out_channels = 8
    N, H, W = 2, 16, 16

    mod = LinearAggregation(inputs_spec, out_channels, k_mod)
    x = {
        "a": jax.random.normal(k_a, (N, inputs_spec["a"], H, W), jnp.float32),
        "b": jax.random.normal(k_b, (N, inputs_spec["b"], H, W), jnp.float32),
    }
    y = jax.block_until_ready(mod(x))

    cat = jnp.concatenate([x["a"], x["b"]], axis=1)
    ref = jnp.einsum("nchw,dc->ndhw", cat, mod.weight) + mod.bias.reshape(
        1, out_channels, 1, 1
    )
    assert y.shape == (N, out_channels, H, W)
    assert jnp.allclose(y, ref, atol=1e-5, rtol=1e-5)

    # ---- Test 2: fp32, odd sizes (ragged batch block, full-extent pixel tile)
    k_mod2, k_c, k_d, k_e = jax.random.split(jax.random.PRNGKey(1), 4)
    inputs_spec2 = {"a": 3, "b": 5, "c": 2}
    out_channels2 = 10
    N2, H2, W2 = 3, 5, 7
    mod2 = LinearAggregation(inputs_spec2, out_channels2, k_mod2)
    x2 = {
        "a": jax.random.normal(k_c, (N2, 3, H2, W2), jnp.float32),
        "b": jax.random.normal(k_d, (N2, 5, H2, W2), jnp.float32),
        "c": jax.random.normal(k_e, (N2, 2, H2, W2), jnp.float32),
    }
    y2 = jax.block_until_ready(mod2(x2))
    cat2 = jnp.concatenate([x2["a"], x2["b"], x2["c"]], axis=1)
    ref2 = jnp.einsum("nchw,dc->ndhw", cat2, mod2.weight) + mod2.bias.reshape(
        1, out_channels2, 1, 1
    )
    assert y2.shape == (N2, out_channels2, H2, W2)
    assert jnp.allclose(y2, ref2, atol=1e-5, rtol=1e-5)

    # ---- Test 3: bf16 opt-in path (fp32 accumulation inside the kernel) -----
    mod_bf = LinearAggregation(inputs_spec, out_channels, k_mod,
                               dtype=jnp.bfloat16)
    y_bf = jax.block_until_ready(mod_bf(x))
    cat_bf = cat.astype(jnp.bfloat16).astype(jnp.float32)
    w_bf = mod_bf.weight.astype(jnp.float32)
    ref_bf = jnp.einsum("nchw,dc->ndhw", cat_bf, w_bf) + mod_bf.bias.reshape(
        1, out_channels, 1, 1
    )
    assert y_bf.dtype == jnp.bfloat16
    assert jnp.allclose(y_bf.astype(jnp.float32), ref_bf, atol=2e-2, rtol=2e-2)

    print("KERNEL_OK")
</pallas_src>

<mosaic_0001>
module attributes {stable_mosaic.version = 11 : i64} {
  func.func @kernel(%arg0: i32, %arg1: i32, %arg2: i32, %arg3: memref<1x4x256xf32, #tpu.memory_space<vmem>>, %arg4: memref<1x4x256xf32, #tpu.memory_space<vmem>>, %arg5: memref<8x4xf32, #tpu.memory_space<vmem>>, %arg6: memref<8x4xf32, #tpu.memory_space<vmem>>, %arg7: memref<8x1xf32, #tpu.memory_space<vmem>>, %arg8: memref<1x8x256xf32, #tpu.memory_space<vmem>>) attributes {dimension_semantics = [#tpu.dimension_semantics<parallel>, #tpu.dimension_semantics<parallel>, #tpu.dimension_semantics<parallel>], iteration_bounds = array<i64: 2, 1, 1>, scalar_prefetch = 0 : i64, scratch_operands = 0 : i64, tpu.core_type = #tpu.core_type<tc>, window_params = [{transform_indices = @transform_0, window_bounds = array<i64: 1, 4, 256>}, {transform_indices = @transform_1, window_bounds = array<i64: 1, 4, 256>}, {transform_indices = @transform_2, window_bounds = array<i64: 8, 4>}, {transform_indices = @transform_3, window_bounds = array<i64: 8, 4>}, {transform_indices = @transform_4, window_bounds = array<i64: 8, 1>}, {transform_indices = @transform_5, window_bounds = array<i64: 1, 8, 256>}]} {
    %c0 = arith.constant 0 : index
    %c0_0 = arith.constant 0 : index
    %0 = vector.load %arg7[%c0, %c0_0] : memref<8x1xf32, #tpu.memory_space<vmem>>, vector<8x1xf32>
    %c0_1 = arith.constant 0 : index
    %c0_2 = arith.constant 0 : index
    %1 = vector.load %arg5[%c0_1, %c0_2] : memref<8x4xf32, #tpu.memory_space<vmem>>, vector<8x4xf32>
    %c0_3 = arith.constant 0 : index
    %c0_4 = arith.constant 0 : index
    %c0_5 = arith.constant 0 : index
    %2 = vector.load %arg3[%c0_3, %c0_4, %c0_5] : memref<1x4x256xf32, #tpu.memory_space<vmem>>, vector<1x4x256xf32>
    %3 = vector.shape_cast %2 : vector<1x4x256xf32> to vector<4x256xf32>
    %cst = arith.constant dense<0.000000e+00> : vector<8x256xf32>
    %4 = tpu.matmul %1, %3, %cst {dimension_numbers = #tpu.dot_dimension_numbers<[1], [0], [0], [1], [0, 0, 1, 1], [], []>} : vector<8x4xf32>, vector<4x256xf32>, vector<8x256xf32> -> vector<8x256xf32>
    %c0_6 = arith.constant 0 : index
    %c0_7 = arith.constant 0 : index
    %5 = vector.load %arg6[%c0_6, %c0_7] : memref<8x4xf32, #tpu.memory_space<vmem>>, vector<8x4xf32>
    %c0_8 = arith.constant 0 : index
    %c0_9 = arith.constant 0 : index
    %c0_10 = arith.constant 0 : index
    %6 = vector.load %arg4[%c0_8, %c0_9, %c0_10] : memref<1x4x256xf32, #tpu.memory_space<vmem>>, vector<1x4x256xf32>
    %7 = vector.shape_cast %6 : vector<1x4x256xf32> to vector<4x256xf32>
    %cst_11 = arith.constant dense<0.000000e+00> : vector<8x256xf32>
    %8 = tpu.matmul %5, %7, %cst_11 {dimension_numbers = #tpu.dot_dimension_numbers<[1], [0], [0], [1], [0, 0, 1, 1], [], []>} : vector<8x4xf32>, vector<4x256xf32>, vector<8x256xf32> -> vector<8x256xf32>
    %9 = arith.addf %4, %8 : vector<8x256xf32>
    %10 = vector.broadcast %0 : vector<8x1xf32> to vector<8x256xf32>
    %11 = arith.addf %9, %10 : vector<8x256xf32>
    %c0_12 = arith.constant 0 : index
    %c0_13 = arith.constant 0 : index
    %c0_14 = arith.constant 0 : index
    %12 = vector.load %arg8[%c0_12, %c0_13, %c0_14] : memref<1x8x256xf32, #tpu.memory_space<vmem>>, vector<1x8x256xf32>
    %13 = vector.shape_cast %12 : vector<1x8x256xf32> to vector<8x256xf32>
    %14 = vector.shape_cast %11 : vector<8x256xf32> to vector<1x8x256xf32>
    tpu.vector_store %arg8[%c0_12, %c0_13, %c0_14], %14 {strides = array<i32>} : memref<1x8x256xf32, #tpu.memory_space<vmem>>, vector<1x8x256xf32>,
    return
  }
  func.func @transform_0(%arg0: i32, %arg1: i32, %arg2: i32) -> (i32, i32, i32) {
    %c0_i32 = arith.constant 0 : i32
    %c0_i32_0 = arith.constant 0 : i32
    return %arg0, %c0_i32, %arg2 : i32, i32, i32
  }
  func.func @transform_1(%arg0: i32, %arg1: i32, %arg2: i32) -> (i32, i32, i32) {
    %c0_i32 = arith.constant 0 : i32
    %c0_i32_0 = arith.constant 0 : i32
    return %arg0, %c0_i32, %arg2 : i32, i32, i32
  }
  func.func @transform_2(%arg0: i32, %arg1: i32, %arg2: i32) -> (i32, i32) {
    %c0_i32 = arith.constant 0 : i32
    %c0_i32_0 = arith.constant 0 : i32
    return %arg1, %c0_i32 : i32, i32
  }
  func.func @transform_3(%arg0: i32, %arg1: i32, %arg2: i32) -> (i32, i32) {
    %c0_i32 = arith.constant 0 : i32
    %c0_i32_0 = arith.constant 0 : i32
    return %arg1, %c0_i32 : i32, i32
  }
  func.func @transform_4(%arg0: i32, %arg1: i32, %arg2: i32) -> (i32, i32) {
    %c0_i32 = arith.constant 0 : i32
    %c0_i32_0 = arith.constant 0 : i32
    return %arg1, %c0_i32 : i32, i32
  }
  func.func @transform_5(%arg0: i32, %arg1: i32, %arg2: i32) -> (i32, i32, i32) {
    %c0_i32 = arith.constant 0 : i32
    return %arg0, %arg1, %arg2 : i32, i32, i32
  }
}

</mosaic_0001>

<llo_original>
// kernel: tpu_custom_call.1
$region0: #{tpu_custom_call.1}
  #allocation0 [shape = 'u32[]', space=smem, size = 0x4, offset = 0x4, fixed_abs, tag = 'smem constant byte address 0x4 - core index']
  #allocation1 [shape = 'u32[144,128]{1,0:T(1,128)}', space=vmem, size = 0x12000, scoped, tag = 'internal scratch']
  %s0 = inlined_call_operand.vmem [shape: f32[2,4,256], index: 0, kind: input, shape index: {}]
  %s1 = inlined_call_operand.vmem [shape: f32[2,4,256], index: 1, kind: input, shape index: {}]
  %s2 = inlined_call_operand.vmem [shape: f32[8,4], index: 2, kind: input, shape index: {}]
  %s3 = inlined_call_operand.vmem [shape: f32[8,4], index: 3, kind: input, shape index: {}]
  %s4 = inlined_call_operand.vmem [shape: f32[8,1], index: 4, kind: input, shape index: {}]
  %s5 = inlined_call_operand.hbm [shape: f32[2,8,256], index: 5, kind: output, shape index: {}]
  %s6 = sld [smem:[#allocation0]]
  $region53: #{tpu_custom_call.1} parent=0
    _
  %s8 = ssub.s32 1, %s6
  %s9 = scalar_select 0, %s8, %s6
  $region1: #{tpu_custom_call.1} parent=0
    #allocation2 [shape = 'u8[16384]{0}', space=vmem, size = 0x4000, scoped, tag = 'output window, operand 0']
    #allocation3 [shape = 's32[2]{0}', space=sflag, size = 0x8, scoped, tag = 'scoped memory for tpu_custom_call.1']
    %10 = vsyncpa [#allocation3], 0
    %s11 = scalar_lea.sflag [#allocation3], 1
    %12 = vsyncpa %s11, 0
    loop: start=0, step=1, limit=4
    $region2: #{tpu_custom_call.1} parent=1 // loop_pre_header
      _
    $region3: #{tpu_custom_call.1} parent=1 // loop_header
      %s14 = sphi 0, %s18
      %p15 = scmp.ge.s32.totalorder %s14, 4
      %s21 = sphi 0, %s40
      %s22 = sphi 0, %s36
      %s23 = sphi 0, %s32
      %s24 = sphi 0, %s21
      %s25 = sphi 0, %s22
      %s26 = sphi 0, %s23
      %s27 = sphi 0, %s24
      %s28 = sphi 0, %s25
      %s29 = sphi 0, %s26
      %s45 = sphi 0, %s47
      %s48 = sphi 0, %s45
      %s49 = sphi 0, %s48
      %s65 = sphi 0, %s49
      %s73 = sphi 0, %s75
      %s76 = sphi 0, %s73
      %s77 = sphi 0, %s76
      %s93 = sphi 0, %s77
      %s99 = sphi 0, %s101
      %s102 = sphi 0, %s99
      %s103 = sphi 0, %s102
      %s119 = sphi 0, %s103
      %s125 = sphi 0, %s127
      %s128 = sphi 0, %s125
      %s129 = sphi 0, %s128
      %s145 = sphi 0, %s129
      %s151 = sphi 0, %s153
      %s154 = sphi 0, %s151
      %s155 = sphi 0, %s154
      %s171 = sphi 0, %s155
      %s181 = sphi 0, %s183
      %s184 = sphi 0, %s181
      %s185 = sphi 0, %s184
      %s201 = sphi 0, %s185
    $region4: #{tpu_custom_call.1} parent=1 // loop_header_branch
      %17 = sbr.rel (%p15) target = $region8
    $region5: #{tpu_custom_call.1} parent=1 // loop_body
      %s19 = ssub.s32 %s14, 1
      %s20 = ssub.s32 %s14, 2
      %s30 = sadd.s32 1, %s23
      %p31 = scmp.ge.s32.totalorder %s30, 1
      %s32 = scalar_select %p31, 0, %s30
      %s33 = sadd.s32 1, %s22
      %s34 = scalar_select %p31, %s33, %s22
      %p35 = scmp.ge.s32.totalorder %s34, 1
      %s36 = scalar_select %p35, 0, %s34
      %s37 = sadd.s32 1, %s21
      %s38 = scalar_select %p35, %s37, %s21
      %p39 = scmp.ge.s32.totalorder %s38, 2
      %s40 = scalar_select %p39, 0, %s38
      %s41 = ssub.s32 %s21, %s40
      %s42 = ssub.s32 %s23, %s32
      %s43 = sor.u32 %s41, %s42
      %p44 = scmp.eq.s32.totalorder %s43, 0
      %s46 = sadd.s32 %s45, 1
      %s47 = scalar_select %p44, %s45, %s46
      %p50 = pneg %p44
      %p51 = scmp.eq.s32.totalorder %s14, 1
      %p52 = por %p50, %p51
      %p53 = scmp.ne.s32.totalorder %s45, %s48
      %p54 = scmp.eq.s32.totalorder %s14, 0
      %p55 = por %p53, %p54
      %p56 = scmp.ne.s32.totalorder %s45, %s48
      %p57 = scmp.eq.s32.totalorder %s19, 1
      %p58 = por %p56, %p57
      %p59 = scmp.ne.s32.totalorder %s48, %s49
      %p60 = scmp.eq.s32.totalorder %s19, 0
      %p61 = por %p59, %p60
      %p62 = scmp.ne.s32.totalorder %s48, %s49
      %p63 = scmp.eq.s32.totalorder %s20, 1
      %p64 = por %p62, %p63
      %p66 = scmp.ne.s32.totalorder %s49, %s65
      %p67 = scmp.eq.s32.totalorder %s20, 0
      %p68 = por %p66, %p67
      %s69 = ssub.s32 %s21, %s40
      %s70 = ssub.s32 %s23, %s32
      %s71 = sor.u32 %s69, %s70
      %p72 = scmp.eq.s32.totalorder %s71, 0
      %s74 = sadd.s32 %s73, 1
      %s75 = scalar_select %p72, %s73, %s74
      %p78 = pneg %p72
      %p79 = scmp.eq.s32.totalorder %s14, 1
      %p80 = por %p78, %p79
      %p81 = scmp.ne.s32.totalorder %s73, %s76
      %p82 = scmp.eq.s32.totalorder %s14, 0
      %p83 = por %p81, %p82
      %p84 = scmp.ne.s32.totalorder %s73, %s76
      %p85 = scmp.eq.s32.totalorder %s19, 1
      %p86 = por %p84, %p85
      %p87 = scmp.ne.s32.totalorder %s76, %s77
      %p88 = scmp.eq.s32.totalorder %s19, 0
      %p89 = por %p87, %p88
      %p90 = scmp.ne.s32.totalorder %s76, %s77
      %p91 = scmp.eq.s32.totalorder %s20, 1
      %p92 = por %p90, %p91
      %p94 = scmp.ne.s32.totalorder %s77, %s93
      %p95 = scmp.eq.s32.totalorder %s20, 0
      %p96 = por %p94, %p95
      %s97 = ssub.s32 %s22, %s36
      %p98 = scmp.eq.s32.totalorder %s97, 0
      %s100 = sadd.s32 %s99, 1
      %s101 = scalar_select %p98, %s99, %s100
      %p104 = pneg %p98
      %p105 = scmp.eq.s32.totalorder %s14, 1
      %p106 = por %p104, %p105
      %p107 = scmp.ne.s32.totalorder %s99, %s102
      %p108 = scmp.eq.s32.totalorder %s14, 0
      %p109 = por %p107, %p108
      %p110 = scmp.ne.s32.totalorder %s99, %s102
      %p111 = scmp.eq.s32.totalorder %s19, 1
      %p112 = por %p110, %p111
      %p113 = scmp.ne.s32.totalorder %s102, %s103
      %p114 = scmp.eq.s32.totalorder %s19, 0
      %p115 = por %p113, %p114
      %p116 = scmp.ne.s32.totalorder %s102, %s103
      %p117 = scmp.eq.s32.totalorder %s20, 1
      %p118 = por %p116, %p117
      %p120 = scmp.ne.s32.totalorder %s103, %s119
      %p121 = scmp.eq.s32.totalorder %s20, 0
      %p122 = por %p120, %p121
      %s123 = ssub.s32 %s22, %s36
      %p124 = scmp.eq.s32.totalorder %s123, 0
      %s126 = sadd.s32 %s125, 1
      %s127 = scalar_select %p124, %s125, %s126
      %p130 = pneg %p124
      %p131 = scmp.eq.s32.totalorder %s14, 1
      %p132 = por %p130, %p131
      %p133 = scmp.ne.s32.totalorder %s125, %s128
      %p134 = scmp.eq.s32.totalorder %s14, 0
      %p135 = por %p133, %p134
      %p136 = scmp.ne.s32.totalorder %s125, %s128
      %p137 = scmp.eq.s32.totalorder %s19, 1
      %p138 = por %p136, %p137
      %p139 = scmp.ne.s32.totalorder %s128, %s129
      %p140 = scmp.eq.s32.totalorder %s19, 0
      %p141 = por %p139, %p140
      %p142 = scmp.ne.s32.totalorder %s128, %s129
      %p143 = scmp.eq.s32.totalorder %s20, 1
      %p144 = por %p142, %p143
      %p146 = scmp.ne.s32.totalorder %s129, %s145
      %p147 = scmp.eq.s32.totalorder %s20, 0
      %p148 = por %p146, %p147
      %s149 = ssub.s32 %s22, %s36
      %p150 = scmp.eq.s32.totalorder %s149, 0
      %s152 = sadd.s32 %s151, 1
      %s153 = scalar_select %p150, %s151, %s152
      %p156 = pneg %p150
      %p157 = scmp.eq.s32.totalorder %s14, 1
      %p158 = por %p156, %p157
      %p159 = scmp.ne.s32.totalorder %s151, %s154
      %p160 = scmp.eq.s32.totalorder %s14, 0
      %p161 = por %p159, %p160
      %p162 = scmp.ne.s32.totalorder %s151, %s154
      %p163 = scmp.eq.s32.totalorder %s19, 1
      %p164 = por %p162, %p163
      %p165 = scmp.ne.s32.totalorder %s154, %s155
      %p166 = scmp.eq.s32.totalorder %s19, 0
      %p167 = por %p165, %p166
      %p168 = scmp.ne.s32.totalorder %s154, %s155
      %p169 = scmp.eq.s32.totalorder %s20, 1
      %p170 = por %p168, %p169
      %p172 = scmp.ne.s32.totalorder %s155, %s171
      %p173 = scmp.eq.s32.totalorder %s20, 0
      %p174 = por %p172, %p173
      %s175 = ssub.s32 %s21, %s40
      %s176 = ssub.s32 %s22, %s36
      %s177 = sor.u32 %s175, %s176
      %s178 = ssub.s32 %s23, %s32
      %s179 = sor.u32 %s177, %s178
      %p180 = scmp.eq.s32.totalorder %s179, 0
      %s182 = sadd.s32 %s181, 1
      %s183 = scalar_select %p180, %s181, %s182
      %p186 = pneg %p180
      %p187 = scmp.eq.s32.totalorder %s14, 1
      %p188 = por %p186, %p187
      %p189 = scmp.ne.s32.totalorder %s181, %s184
      %p190 = scmp.eq.s32.totalorder %s14, 0
      %p191 = por %p189, %p190
      %p192 = scmp.ne.s32.totalorder %s181, %s184
      %p193 = scmp.eq.s32.totalorder %s19, 1
      %p194 = por %p192, %p193
      %p195 = scmp.ne.s32.totalorder %s184, %s185
      %p196 = scmp.eq.s32.totalorder %s19, 0
      %p197 = por %p195, %p196
      %p198 = scmp.ne.s32.totalorder %s184, %s185
      %p199 = scmp.eq.s32.totalorder %s20, 1
      %p200 = por %p198, %p199
      %p202 = scmp.ne.s32.totalorder %s185, %s201
      %p203 = scmp.eq.s32.totalorder %s20, 0
      %p204 = por %p202, %p203
      %p205 = scmp.le.s32.totalorder 1, %s14
      %p206 = scmp.lt.s32.totalorder %s14, 3
      %p207 = pnand %p205, %p206
      %p208 = pneg %p207
      // Predicated region
      $region9: #{tpu_custom_call.1} parent=5 // pred_check
        _
      $region10: #{tpu_custom_call.1} parent=5 // pred_check_branch
        %210 = sbr.rel (%p207) target = $region12
      $region11: #{tpu_custom_call.1} parent=5 // pred_region
        %s211 = ssub.s32 %s14, 1
        // Predicated region
        $region13: #{tpu_custom_call.1} parent=11 // pred_check
          %p212 = pneg %p115
        $region14: #{tpu_custom_call.1} parent=11 // pred_check_branch
          %214 = sbr.rel (%p212) target = $region16
        $region15: #{tpu_custom_call.1} parent=11 // pred_region
          %p215 = scmp.lt.s32.totalorder %s25, 0
          %s216 = scalar_select %p215, %s25, 0
          %s217 = smul.addr %s216, 8
          %s218 = scalar_lea.vmem %s2, %s217
        $region16: #{tpu_custom_call.1} parent=11 // pred_fallthru
          _
        // Predicated region
        $region17: #{tpu_custom_call.1} parent=11 // pred_check
          %p219 = pneg %p141
        $region18: #{tpu_custom_call.1} parent=11 // pred_check_branch
          %221 = sbr.rel (%p219) target = $region20
        $region19: #{tpu_custom_call.1} parent=11 // pred_region
          %p222 = scmp.lt.s32.totalorder %s25, 0
          %s223 = scalar_select %p222, %s25, 0
          %s224 = smul.addr %s223, 8
          %s225 = scalar_lea.vmem %s3, %s224
        $region20: #{tpu_custom_call.1} parent=11 // pred_fallthru
          _
        // Predicated region
        $region21: #{tpu_custom_call.1} parent=11 // pred_check
          %p226 = pneg %p167
        $region22: #{tpu_custom_call.1} parent=11 // pred_check_branch
          %228 = sbr.rel (%p226) target = $region24
        $region23: #{tpu_custom_call.1} parent=11 // pred_region
          %p229 = scmp.lt.s32.totalorder %s25, 0
          %s230 = scalar_select %p229, %s25, 0
          %s231 = smul.addr %s230, 8
          %s232 = scalar_lea.vmem %s4, %s231
        $region24: #{tpu_custom_call.1} parent=11 // pred_fallthru
          _
      $region12: #{tpu_custom_call.1} parent=5 // pred_fallthru
        _
      %p233 = scmp.lt.s32.totalorder %s14, 2
      // Predicated region
      $region25: #{tpu_custom_call.1} parent=5 // pred_check
        %p234 = pneg %p233
      $region26: #{tpu_custom_call.1} parent=5 // pred_check_branch
        %236 = sbr.rel (%p234) target = $region28
      $region27: #{tpu_custom_call.1} parent=5 // pred_region
        // Predicated region
        $region29: #{tpu_custom_call.1} parent=27 // pred_check
          %p237 = pneg %p55
        $region30: #{tpu_custom_call.1} parent=27 // pred_check_branch
          %239 = sbr.rel (%p237) target = $region32
        $region31: #{tpu_custom_call.1} parent=27 // pred_region
          %s240 = smul.u32 2, %s23
          %p241 = scmp.lt.s32.totalorder %s21, 1
          %s242 = scalar_select %p241, %s21, 1
          %p243 = scmp.lt.s32.totalorder %s240, 1
          %s244 = scalar_select %p243, %s240, 1
          %s245 = smul.addr %s242, 2
          %s246 = sadd.s32 %s244, %s245
          %s247 = smul.addr %s246, 4
          %s248 = scalar_lea.vmem %s0, %s247
          %s249 = smul.u32 2, %s23
        $region32: #{tpu_custom_call.1} parent=27 // pred_fallthru
          _
        // Predicated region
        $region33: #{tpu_custom_call.1} parent=27 // pred_check
          %p250 = pneg %p83
        $region34: #{tpu_custom_call.1} parent=27 // pred_check_branch
          %252 = sbr.rel (%p250) target = $region36
        $region35: #{tpu_custom_call.1} parent=27 // pred_region
          %s253 = smul.u32 2, %s23
          %p254 = scmp.lt.s32.totalorder %s21, 1
          %s255 = scalar_select %p254, %s21, 1
          %p256 = scmp.lt.s32.totalorder %s253, 1
          %s257 = scalar_select %p256, %s253, 1
          %s258 = smul.addr %s255, 2
          %s259 = sadd.s32 %s257, %s258
          %s260 = smul.addr %s259, 4
          %s261 = scalar_lea.vmem %s1, %s260
          %s262 = smul.u32 2, %s23
        $region36: #{tpu_custom_call.1} parent=27 // pred_fallthru
          _
      $region28: #{tpu_custom_call.1} parent=5 // pred_fallthru
        _
      %p263 = scmp.le.s32.totalorder 1, %s14
      %p264 = scmp.lt.s32.totalorder %s14, 3
      %p265 = pnand %p263, %p264
      %p266 = pneg %p265
      // Predicated region
      $region37: #{tpu_custom_call.1} parent=5 // pred_check
        _
      $region38: #{tpu_custom_call.1} parent=5 // pred_check_branch
        %268 = sbr.rel (%p265) target = $region40
      $region39: #{tpu_custom_call.1} parent=5 // pred_region
        %s269 = ssub.s32 %s14, 1
        %s270 = smul.u32 2, %s26
        %p271 = scmp.lt.s32.totalorder %s24, 1
        %s272 = scalar_select %p271, %s24, 1
        %p273 = scmp.lt.s32.totalorder %s270, 1
        %s274 = scalar_select %p273, %s270, 1
        %s275 = smul.addr %s272, 2
        %s276 = sadd.s32 %s274, %s275
        %s277 = smul.addr %s276, 4
        %s278 = scalar_lea.vmem %s0, %s277
        %p279 = pneg %p61
        %p280 = pneg %p58
        %s281 = smul.u32 2, %s26
        %p282 = scmp.lt.s32.totalorder %s24, 1
        %s283 = scalar_select %p282, %s24, 1
        %p284 = scmp.lt.s32.totalorder %s281, 1
        %s285 = scalar_select %p284, %s281, 1
        %s286 = smul.addr %s283, 2
        %s287 = sadd.s32 %s285, %s286
        %s288 = smul.addr %s287, 4
        %s289 = scalar_lea.vmem %s1, %s288
        %p290 = pneg %p89
        %p291 = pneg %p86
        %p292 = scmp.lt.s32.totalorder %s25, 0
        %s293 = scalar_select %p292, %s25, 0
        %s294 = smul.addr %s293, 8
        %s295 = scalar_lea.vmem %s2, %s294
        %p296 = pneg %p115
        %p297 = pneg %p112
        %p298 = scmp.lt.s32.totalorder %s25, 0
        %s299 = scalar_select %p298, %s25, 0
        %s300 = smul.addr %s299, 8
        %s301 = scalar_lea.vmem %s3, %s300
        %p302 = pneg %p141
        %p303 = pneg %p138
        %p304 = scmp.lt.s32.totalorder %s25, 0
        %s305 = scalar_select %p304, %s25, 0
        %s306 = smul.addr %s305, 8
        %s307 = scalar_lea.vmem %s4, %s306
        %p308 = pneg %p167
        %p309 = pneg %p164
        %p310 = pneg %p197
        %p311 = pneg %p194
        %s312 = sand.u32 %s184, 1
        %s313 = scalar_lea.sflag [#allocation3], %s312
        %s314 = sand.u32 %s184, 1
        %s315 = smul.addr %s314, 16
        %s316 = scalar_lea.vmem [#allocation2], %s315
        %s317 = smul.u32 2, %s26
        %p318 = scmp.lt.s32.totalorder %s24, 1
        %s319 = scalar_select %p318, %s24, 1
        %p320 = scmp.lt.s32.totalorder %s317, 1
        %s321 = scalar_select %p320, %s317, 1
        %s322 = smul.addr %s319, 2
        %s323 = sadd.s32 %s321, %s322
        %s324 = smul.addr %s323, 4
        %s325 = scalar_lea.vmem %s0, %s324
        %s326 = smul.u32 2, %s26
        %s327 = smul.u32 2, %s26
        %p328 = scmp.lt.s32.totalorder %s24, 1
        %s329 = scalar_select %p328, %s24, 1
        %p330 = scmp.lt.s32.totalorder %s327, 1
        %s331 = scalar_select %p330, %s327, 1
        %s332 = smul.addr %s329, 2
        %s333 = sadd.s32 %s331, %s332
        %s334 = smul.addr %s333, 4
        %s335 = scalar_lea.vmem %s1, %s334
        %s336 = smul.u32 2, %s26
        %p337 = scmp.lt.s32.totalorder %s25, 0
        %s338 = scalar_select %p337, %s25, 0
        %s339 = smul.addr %s338, 8
        %s340 = scalar_lea.vmem %s2, %s339
        %p341 = scmp.lt.s32.totalorder %s25, 0
        %s342 = scalar_select %p341, %s25, 0
        %s343 = smul.addr %s342, 8
        %s344 = scalar_lea.vmem %s3, %s343
        %p345 = scmp.lt.s32.totalorder %s25, 0
        %s346 = scalar_select %p345, %s25, 0
        %s347 = smul.addr %s346, 8
        %s348 = scalar_lea.vmem %s4, %s347
        %s349 = smul.u32 2, %s26
        %v350 = vld [vmem:[%s348] sm:$0xff]
        %v351 = vld [vmem:[%s340] sm:$0xff]
        %v352 = vld [vmem:[%s325] sm:$0xff]
        %v353 = vld [vmem:[%s344] sm:$0xff]
        %v354 = vld [vmem:[%s335] sm:$0xff]
        %v356 = vcombine.high %v354, %v354
        %vm357 = vcmask 31744
        %v359 = vsel %vm357, %v353, 0
        %vm361 = vcmask 1043456
        %v362 = vsel %vm361, %v354, 0
        %v364 = vsel %vm361, %v356, 0
        %366 = vmatprep.subr.mxu0 %v364
        %367 = vmatpush1.msra.mxu0 %v362
        %368 = vmatprep.subr.mxu0 0.0
        %369 = vmatpush1.msra.mxu0 0.0
        %370 = vmatprep.subr.mxu0 0.0
        %371 = vmatpush1.msra.mxu0 0.0
        %372 = vmatprep.subr.mxu0 0.0
        %373 = vmatpush1.msra.mxu0 0.0
        %374 = vmatprep.subr.mxu0 0.0
        %375 = vmatpush1.msra.mxu0 0.0
        %376 = vmatprep.subr.mxu0 0.0
        %377 = vmatpush1.msra.mxu0 0.0
        %378 = vmatprep.subr.mxu0 0.0
        %379 = vmatpush1.msra.mxu0 0.0
        %380 = vmatprep.subr.mxu0 0.0
        %381 = vmatpush1.msra.mxu0 0.0
        %382 = vmatprep.subr.mxu0 0.0
        %383 = vmatpush1.msra.mxu0 0.0
        %384 = vmatprep.subr.mxu0 0.0
        %385 = vmatpush1.msra.mxu0 0.0
        %386 = vmatprep.subr.mxu0 0.0
        %387 = vmatpush1.msra.mxu0 0.0
        %388 = vmatprep.subr.mxu0 0.0
        %389 = vmatpush1.msra.mxu0 0.0
        %390 = vmatprep.subr.mxu0 0.0
        %391 = vmatpush1.msra.mxu0 0.0
        %392 = vmatprep.subr.mxu0 0.0
        %393 = vmatpush1.msra.mxu0 0.0
        %394 = vmatprep.subr.mxu0 0.0
        %395 = vmatpush1.msra.mxu0 0.0
        %396 = vmatprep.subr.mxu0 0.0
        %397 = vmatpush1.msra.mxu0 0.0
        %398 = vmatprep.subr.mxu0 0.0
        %399 = vmatpush1.msra.mxu0 0.0
        %400 = vmatprep.subr.mxu0 0.0
        %401 = vmatpush1.msra.mxu0 0.0
        %402 = vmatprep.subr.mxu0 0.0
        %403 = vmatpush1.msra.mxu0 0.0
        %404 = vmatprep.subr.mxu0 0.0
        %405 = vmatpush1.msra.mxu0 0.0
        %406 = vmatprep.subr.mxu0 0.0
        %407 = vmatpush1.msra.mxu0 0.0
        %408 = vmatprep.subr.mxu0 0.0
        %409 = vmatpush1.msra.mxu0 0.0
        %410 = vmatprep.subr.mxu0 0.0
        %411 = vmatpush1.msra.mxu0 0.0
        %412 = vmatprep.subr.mxu0 0.0
        %413 = vmatpush1.msra.mxu0 0.0
        %414 = vmatprep.subr.mxu0 0.0
        %415 = vmatpush1.msra.mxu0 0.0
        %416 = vmatprep.subr.mxu0 0.0
        %417 = vmatpush1.msra.mxu0 0.0
        %418 = vmatprep.subr.mxu0 0.0
        %419 = vmatpush1.msra.mxu0 0.0
        %420 = vmatprep.subr.mxu0 0.0
        %421 = vmatpush1.msra.mxu0 0.0
        %422 = vmatprep.subr.mxu0 0.0
        %423 = vmatpush1.msra.mxu0 0.0
        %424 = vmatprep.subr.mxu0 0.0
        %425 = vmatpush1.msra.mxu0 0.0
        %426 = vmatprep.subr.mxu0 0.0
        %427 = vmatpush1.msra.mxu0 0.0
        %428 = vmatprep.subr.mxu0 0.0
        %429 = vmatpush1.msra.mxu0 0.0
        %430 = vmatprep.mubr.f32.mxu0 0.0
        %431 = vmatmul.mubr.f32.gmra.mrb[0].mxu0 %v359
        %v432 = vpop.f32.mrb[0].mxu0
        %v433 = vadd.f32 0.0, %v432
        %v434 = vpop.f32.mrb[0].mxu0
        %v435 = vadd.f32 0.0, %v434
        %436 = vdwg.mxu0
        %v438 = vcombine.high %v352, %v352
        %v440 = vsel %vm357, %v351, 0
        %v442 = vsel %vm361, %v352, 0
        %v444 = vsel %vm361, %v438, 0
        %446 = vmatprep.subr.mxu0 %v444
        %447 = vmatpush1.msra.mxu0 %v442
        %448 = vmatprep.subr.mxu0 0.0
        %449 = vmatpush1.msra.mxu0 0.0
        %450 = vmatprep.subr.mxu0 0.0
        %451 = vmatpush1.msra.mxu0 0.0
        %452 = vmatprep.subr.mxu0 0.0
        %453 = vmatpush1.msra.mxu0 0.0
        %454 = vmatprep.subr.mxu0 0.0
        %455 = vmatpush1.msra.mxu0 0.0
        %456 = vmatprep.subr.mxu0 0.0
        %457 = vmatpush1.msra.mxu0 0.0
        %458 = vmatprep.subr.mxu0 0.0
        %459 = vmatpush1.msra.mxu0 0.0
        %460 = vmatprep.subr.mxu0 0.0
        %461 = vmatpush1.msra.mxu0 0.0
        %462 = vmatprep.subr.mxu0 0.0
        %463 = vmatpush1.msra.mxu0 0.0
        %464 = vmatprep.subr.mxu0 0.0
        %465 = vmatpush1.msra.mxu0 0.0
        %466 = vmatprep.subr.mxu0 0.0
        %467 = vmatpush1.msra.mxu0 0.0
        %468 = vmatprep.subr.mxu0 0.0
        %469 = vmatpush1.msra.mxu0 0.0
        %470 = vmatprep.subr.mxu0 0.0
        %471 = vmatpush1.msra.mxu0 0.0
        %472 = vmatprep.subr.mxu0 0.0
        %473 = vmatpush1.msra.mxu0 0.0
        %474 = vmatprep.subr.mxu0 0.0
        %475 = vmatpush1.msra.mxu0 0.0
        %476 = vmatprep.subr.mxu0 0.0
        %477 = vmatpush1.msra.mxu0 0.0
        %478 = vmatprep.subr.mxu0 0.0
        %479 = vmatpush1.msra.mxu0 0.0
        %480 = vmatprep.subr.mxu0 0.0
        %481 = vmatpush1.msra.mxu0 0.0
        %482 = vmatprep.subr.mxu0 0.0
        %483 = vmatpush1.msra.mxu0 0.0
        %484 = vmatprep.subr.mxu0 0.0
        %485 = vmatpush1.msra.mxu0 0.0
        %486 = vmatprep.subr.mxu0 0.0
        %487 = vmatpush1.msra.mxu0 0.0
        %488 = vmatprep.subr.mxu0 0.0
        %489 = vmatpush1.msra.mxu0 0.0
        %490 = vmatprep.subr.mxu0 0.0
        %491 = vmatpush1.msra.mxu0 0.0
        %492 = vmatprep.subr.mxu0 0.0
        %493 = vmatpush1.msra.mxu0 0.0
        %494 = vmatprep.subr.mxu0 0.0
        %495 = vmatpush1.msra.mxu0 0.0
        %496 = vmatprep.subr.mxu0 0.0
        %497 = vmatpush1.msra.mxu0 0.0
        %498 = vmatprep.subr.mxu0 0.0
        %499 = vmatpush1.msra.mxu0 0.0
        %500 = vmatprep.subr.mxu0 0.0
        %501 = vmatpush1.msra.mxu0 0.0
        %502 = vmatprep.subr.mxu0 0.0
        %503 = vmatpush1.msra.mxu0 0.0
        %504 = vmatprep.subr.mxu0 0.0
        %505 = vmatpush1.msra.mxu0 0.0
        %506 = vmatprep.subr.mxu0 0.0
        %507 = vmatpush1.msra.mxu0 0.0
        %508 = vmatprep.subr.mxu0 0.0
        %509 = vmatpush1.msra.mxu0 0.0
        %510 = vmatprep.mubr.f32.mxu0 0.0
        %511 = vmatmul.mubr.f32.gmra.mrb[0].mxu0 %v440
        %v512 = vpop.f32.mrb[0].mxu0
        %v513 = vadd.f32 %v433, %v512
        %v514 = vpop.f32.mrb[0].mxu0
        %v515 = vadd.f32 %v435, %v514
        %516 = vdwg.mxu0
        %518 = vset.pattern.permute.xlu0 0
        %519 = vperm.xlu0 %518, %v350
        %v520 = vpop.permute.xlu0 %519
        %v522 = vadd.f32 %v513, %v520
        %v523 = vadd.f32 %v515, %v520
        %524 = vst [vmem:[%s316] sm:$0xff] %v522
        %525 = vst [vmem:[%s316 + $0x8] sm:$0xff] %v523
        %s526 = sand.u32 %s184, 1
        %s527 = scalar_lea.sflag [#allocation3], %s526
        %s528 = sand.u32 %s184, 1
        %s529 = smul.addr %s528, 16
        %s530 = scalar_lea.vmem [#allocation2], %s529
        // Predicated region
        $region41: #{tpu_custom_call.1} parent=39 // pred_check
          %p531 = pneg %p194
        $region42: #{tpu_custom_call.1} parent=39 // pred_check_branch
          %533 = sbr.rel (%p531) target = $region44
        $region43: #{tpu_custom_call.1} parent=39 // pred_region
          %s534 = smul.u32 2, %s26
          %s536 = ssub.s32 256, 256
          %537 = vsyncadd %s527, %s536
          %s538 = smul.addr %s25, 2
          %s539 = sadd.s32 %s534, %s538
          %s540 = smul.addr %s24, 2
          %s541 = sadd.s32 %s539, %s540
          %s542 = smul.addr %s541, 128
          %s543 = scalar_lea.hbm %s5, %s542
          %s545 = sshll.u32 %s530, 4
          %s546 = int_to_ptr.vmem [resolvable:$true] %s545
          %548 = dma.vmem_to_hbm [thread:$0]  %s546, 256, %s543, %s527
        $region44: #{tpu_custom_call.1} parent=39 // pred_fallthru
          _
      $region40: #{tpu_custom_call.1} parent=5 // pred_fallthru
        _
      %p549 = scmp.le.s32.totalorder 2, %s14
      // Predicated region
      $region45: #{tpu_custom_call.1} parent=5 // pred_check
        %p550 = pneg %p549
      $region46: #{tpu_custom_call.1} parent=5 // pred_check_branch
        %552 = sbr.rel (%p550) target = $region48
      $region47: #{tpu_custom_call.1} parent=5 // pred_region
        %s553 = ssub.s32 %s14, 2
        // Predicated region
        $region49: #{tpu_custom_call.1} parent=47 // pred_check
          %p554 = pneg %p200
        $region50: #{tpu_custom_call.1} parent=47 // pred_check_branch
          %556 = sbr.rel (%p554) target = $region52
        $region51: #{tpu_custom_call.1} parent=47 // pred_region
          %s557 = sand.u32 %s185, 1
          %s558 = scalar_lea.sflag [#allocation3], %s557
          %s559 = sand.u32 %s185, 1
          %s560 = smul.addr %s559, 16
          %s561 = scalar_lea.vmem [#allocation2], %s560
          %562 = dma.done %s558, 256
        $region52: #{tpu_custom_call.1} parent=47 // pred_fallthru
          _
      $region48: #{tpu_custom_call.1} parent=5 // pred_fallthru
        _
    $region6: #{tpu_custom_call.1} parent=1 // loop_footer
      %s18 = sadd.s32 1, %s14
    $region7: #{tpu_custom_call.1} parent=1 // loop_footer_branch
      %13 = sbr.rel target = $region3
    $region8: #{tpu_custom_call.1} parent=1 // loop_exit
      _
    %563 = vsyncpa [#allocation3], 1
    %s564 = scalar_lea.sflag [#allocation3], 1
    %565 = vsyncpa %s564, 1

</llo_original>
